<compile_context>
chip_gen: v6e
topology: v6e:2x2x1
jax: 0.10.0
libtpu: 0.0.40
codegen_flags: <defaults>
</compile_context>

<pallas_src>
import jax
import jax.numpy as jnp
from jax.experimental import pallas as pl
from jax.experimental.pallas import tpu as pltpu


_LANE = 128
_TARGET_TILE_BYTES = 2 * 1024 * 1024  # ~2 MiB/buffer; 2 arrays x 2 buffers = 8 MiB pipelined VMEM


def _identity_copy_kernel(x_ref, o_ref):
    # BaseModel.forward is abstract -> no defined compute; pass the tile through.
    o_ref[...] = x_ref[...]


def _choose_lanes(total_padded: int) -> int:
    """Widest lane count (multiple of 128) that still leaves >= 8 rows."""
    for lanes in (2048, 1024, 512, 256, 128):
        if total_padded % lanes == 0 and total_padded // lanes >= 8:
            return lanes
    return _LANE  # total_padded is a multiple of 128 by construction


def _pick_tile_rows(rows: int, lanes: int, itemsize: int) -> int:
    """Byte-sized row tile (~2 MiB), multiple of 8, split so v7x gets >=2 steps."""
    tile_rows = max(8, (_TARGET_TILE_BYTES // (lanes * itemsize)) // 8 * 8)
    tile_rows = min(tile_rows, rows)
    # Give the megacore "parallel" axis something to shard: aim for >= 4 grid
    # steps on big tensors, >= 2 otherwise (keeps tiles a multiple of 8 rows).
    for min_steps in (4, 2):
        if rows >= min_steps * 8 and pl.cdiv(rows, tile_rows) < min_steps:
            tile_rows = max(8, (rows // min_steps) // 8 * 8)
            break
    return tile_rows


def base_model_forward(x: jax.Array) -> jax.Array:
    """Production forward for the abstract BaseModel: identity, zero HBM traffic."""
    return x


def base_model_forward_pallas(x: jax.Array) -> jax.Array:
    """Identity forward routed through a Pallas kernel (bandwidth-roofline copy)."""
    orig_shape = x.shape
    total = x.size
    itemsize = jnp.dtype(x.dtype).itemsize

    # Lane-dense layout: pad the flat tensor to a multiple of 128 if needed so
    # the store path is never masked (vst, not vst.msk).
    pad = (-total) % _LANE
    flat = x.reshape(-1)
    if pad:
        flat = jnp.pad(flat, (0, pad))
    total_padded = total + pad

    lanes = _choose_lanes(total_padded)
    rows = total_padded // lanes
    x2d = flat.reshape(rows, lanes)

    tile_rows = _pick_tile_rows(rows, lanes, itemsize)
    grid = (pl.cdiv(rows, tile_rows),)

    out2d = pl.pallas_call(
        _identity_copy_kernel,
        out_shape=jax.ShapeDtypeStruct((rows, lanes), x2d.dtype),
        grid_spec=pltpu.PrefetchScalarGridSpec(
            num_scalar_prefetch=0,
            grid=grid,
            in_specs=[pl.BlockSpec((tile_rows, lanes), lambda i: (i, 0))],
            out_specs=pl.BlockSpec((tile_rows, lanes), lambda i: (i, 0)),
        ),
        compiler_params=pltpu.CompilerParams(
            # Independent row tiles -> shard across both TCs on v7x; no-op on v5e/v6e.
            dimension_semantics=("parallel",),
        ),
    )(x2d)

    out_flat = out2d.reshape(-1)
    if pad:
        out_flat = out_flat[:total]
    return out_flat.reshape(orig_shape)


# TODO(synk): get_loss() and predict() are abstract in BaseModel with no defined
# semantics; they must be implemented per concrete subclass, not here.
# TODO(synk): save_weights/load_weights are torch.save/load disk I/O — no Pallas
# equivalent and out of scope for a kernel.
# num_parameters for the base class is trivially 0 (no registered parameters).
BASE_MODEL_NUM_PARAMETERS = 0


if __name__ == "__main__":
    key = jax.random.PRNGKey(0)
    # Small NCHW input consistent with a vision-style model: (N=2, C=4, H=16, W=16)
    x = jax.random.normal(key, (2, 4, 16, 16), dtype=jnp.float32)

    # Production path: identity with no kernel launch at all.
    y_fast = base_model_forward(x)
    assert y_fast is x

    # Pallas path (lane-dense, byte-sized tiles).
    y = jax.block_until_ready(base_model_forward_pallas(x))
    assert y.shape == x.shape and y.dtype == x.dtype
    assert bool(jnp.array_equal(y, x))

    # Exercise the padded (non-multiple-of-128) fallback as well.
    key2 = jax.random.PRNGKey(0)
    x_odd = jax.random.normal(key2, (2, 3, 5, 7), dtype=jnp.float32)  # 210 elems
    y_odd = jax.block_until_ready(base_model_forward_pallas(x_odd))
    assert y_odd.shape == x_odd.shape and bool(jnp.array_equal(y_odd, x_odd))

    assert BASE_MODEL_NUM_PARAMETERS == 0
    print("KERNEL_OK")
</pallas_src>

<mosaic_0001>
module attributes {stable_mosaic.version = 11 : i64} {
  func.func @_identity_copy_kernel(%arg0: i32, %arg1: memref<8x256xf32, #tpu.memory_space<vmem>>, %arg2: memref<8x256xf32, #tpu.memory_space<vmem>>) attributes {dimension_semantics = [#tpu.dimension_semantics<parallel>], iteration_bounds = array<i64: 1>, scalar_prefetch = 0 : i64, scratch_operands = 0 : i64, tpu.core_type = #tpu.core_type<tc>, window_params = [{transform_indices = @transform_0, window_bounds = array<i64: 8, 256>}, {transform_indices = @transform_1, window_bounds = array<i64: 8, 256>}]} {
    %c0 = arith.constant 0 : index
    %c0_0 = arith.constant 0 : index
    %0 = vector.load %arg1[%c0, %c0_0] : memref<8x256xf32, #tpu.memory_space<vmem>>, vector<8x256xf32>
    %c0_1 = arith.constant 0 : index
    %c0_2 = arith.constant 0 : index
    %1 = vector.load %arg2[%c0_1, %c0_2] : memref<8x256xf32, #tpu.memory_space<vmem>>, vector<8x256xf32>
    tpu.vector_store %arg2[%c0_1, %c0_2], %0 {strides = array<i32>} : memref<8x256xf32, #tpu.memory_space<vmem>>, vector<8x256xf32>,
    return
  }
  func.func @transform_0(%arg0: i32) -> (i32, i32) {
    %c0_i32 = arith.constant 0 : i32
    %c0_i32_0 = arith.constant 0 : i32
    return %arg0, %c0_i32 : i32, i32
  }
  func.func @transform_1(%arg0: i32) -> (i32, i32) {
    %c0_i32 = arith.constant 0 : i32
    %c0_i32_0 = arith.constant 0 : i32
    return %arg0, %c0_i32 : i32, i32
  }
}

</mosaic_0001>

<llo_original>
// kernel: tpu_custom_call.1
$region0: #{tpu_custom_call.1}
  #allocation0 [shape = 'u32[]', space=smem, size = 0x4, offset = 0x4, fixed_abs, tag = 'smem constant byte address 0x4 - core index']
  #allocation1 [shape = 'u32[144,128]{1,0:T(1,128)}', space=vmem, size = 0x12000, scoped, tag = 'internal scratch']
  %s0 = inlined_call_operand.hbm [shape: f32[8,256], index: 0, kind: input, shape index: {}]
  %s1 = inlined_call_operand.hbm [shape: f32[8,256], index: 1, kind: output, shape index: {}]
  %s2 = sld [smem:[#allocation0]]
  $region18: #{tpu_custom_call.1} parent=0
    _
  %s4 = ssub.s32 1, %s2
  %s5 = scalar_select 0, %s4, %s2
  $region1: #{tpu_custom_call.1} parent=0
    #allocation2 [shape = 'u8[8192]{0}', space=vmem, size = 0x2000, scoped, tag = 'input window, operand 0, single buffered']
    #allocation3 [shape = 's32[1]{0}', space=sflag, size = 0x4, scoped, tag = 'scoped memory for tpu_custom_call.1']
    #allocation4 [shape = 's32[1]{0}', space=sflag, size = 0x4, scoped, tag = 'scoped memory for tpu_custom_call.1']
    #allocation5 [shape = 'u8[8192]{0}', space=vmem, size = 0x2000, scoped, tag = 'output window, operand 0, single buffered']
    %6 = vsyncpa [#allocation3], 0
    %7 = vsyncpa [#allocation4], 0
    // Predicated region
    $region2: #{tpu_custom_call.1} parent=1 // pred_check
      _
    $region3: #{tpu_custom_call.1} parent=1 // pred_check_branch
      %9 = sbr.rel (0) target = $region5
    $region4: #{tpu_custom_call.1} parent=1 // pred_region
      %s11 = ssub.s32 256, 256
      %12 = vsyncadd [#allocation3], %s11
      %s14 = sshll.u32 [#allocation2], 4
      %s15 = int_to_ptr.vmem [resolvable:$true] %s14
      %17 = dma.hbm_to_vmem [thread:$0]  %s0, 256, %s15, [#allocation3]
    $region5: #{tpu_custom_call.1} parent=1 // pred_fallthru
      _
    // Predicated region
    $region6: #{tpu_custom_call.1} parent=1 // pred_check
      _
    $region7: #{tpu_custom_call.1} parent=1 // pred_check_branch
      %19 = sbr.rel (0) target = $region9
    $region8: #{tpu_custom_call.1} parent=1 // pred_region
      %20 = dma.done [#allocation3], 256
    $region9: #{tpu_custom_call.1} parent=1 // pred_fallthru
      _
    %v21 = vld [vmem:[#allocation2] sm:$0xff]
    %v22 = vld [vmem:[#allocation2 + $0x8] sm:$0xff]
    %23 = vst [vmem:[#allocation5] sm:$0xff] %v21
    %24 = vst [vmem:[#allocation5 + $0x8] sm:$0xff] %v22
    // Predicated region
    $region10: #{tpu_custom_call.1} parent=1 // pred_check
      _
    $region11: #{tpu_custom_call.1} parent=1 // pred_check_branch
      %26 = sbr.rel (0) target = $region13
    $region12: #{tpu_custom_call.1} parent=1 // pred_region
      %s28 = ssub.s32 256, 256
      %29 = vsyncadd [#allocation4], %s28
      %s31 = sshll.u32 [#allocation5], 4
      %s32 = int_to_ptr.vmem [resolvable:$true] %s31
      %34 = dma.vmem_to_hbm [thread:$0]  %s32, 256, %s1, [#allocation4]
    $region13: #{tpu_custom_call.1} parent=1 // pred_fallthru
      _
    // Predicated region
    $region14: #{tpu_custom_call.1} parent=1 // pred_check
      _
    $region15: #{tpu_custom_call.1} parent=1 // pred_check_branch
      %36 = sbr.rel (0) target = $region17
    $region16: #{tpu_custom_call.1} parent=1 // pred_region
      %37 = dma.done [#allocation4], 256
    $region17: #{tpu_custom_call.1} parent=1 // pred_fallthru
      _
    %38 = vsyncpa [#allocation3], 1
    %39 = vsyncpa [#allocation4], 1

</llo_original>
